<compile_context>
chip_gen: v5e
topology: v5e:2x2
jax: 0.10.0
libtpu: 0.0.40
codegen_flags: <defaults>
</compile_context>

<pallas_src>
import jax
import jax.numpy as jnp
from jax.experimental import pallas as pl
from jax.experimental.pallas import tpu as pltpu

LN_EPS = 1e-5
LEAKY_SLOPE = 0.01


def dsconv_kernel(x_ref, g_ref, b_ref, dw_ref, pw_ref, pb_ref, o_ref):
    # x_ref : (bb, T, D)  input block (also the residual)
    # g_ref : (1, D)      layernorm gamma
    # b_ref : (1, D)      layernorm beta
    # dw_ref: (K, D)      depthwise taps, per-tap per-channel weights
    # pw_ref: (D, D)      pointwise weight, pre-transposed so out = y @ pw
    # pb_ref: (1, D)      pointwise bias
    # o_ref : (bb, T, D)  output block
    x = x_ref[...]                                   # (bb, T, D) f32
    bb, T, D = x.shape
    K = dw_ref.shape[0]
    pad = (K - 1) // 2

    # ---- LayerNorm over D (lane axis) ----
    mean = jnp.mean(x, axis=-1, keepdims=True)
    xc = x - mean
    var = jnp.mean(xc * xc, axis=-1, keepdims=True)
    xln = xc * jax.lax.rsqrt(var + LN_EPS)
    xln = xln * g_ref[0][None, None, :] + b_ref[0][None, None, :]

    # ---- depthwise conv over T (zero padding = k//2), pure VPU ----
    zeros = jnp.zeros((bb, pad, D), jnp.float32)
    xp = jnp.concatenate([zeros, xln, zeros], axis=1)        # (bb, T+2*pad, D)
    y = xp[:, 0:T, :] * dw_ref[0][None, None, :]
    for k in range(1, K):                                    # static K-tap loop
        y = y + xp[:, k:k + T, :] * dw_ref[k][None, None, :]

    # ---- pointwise Linear on the MXU ----
    z = jnp.dot(y.reshape(bb * T, D), pw_ref[...],
                preferred_element_type=jnp.float32)
    z = (z + pb_ref[0][None, :]).reshape(bb, T, D)

    # ---- leaky ReLU + residual (dropout == identity at inference) ----
    z = jnp.where(z > 0.0, z, LEAKY_SLOPE * z)
    o_ref[...] = (z + x).astype(o_ref.dtype)


def depthwise_separable_conv(x, ln_gamma, ln_beta, dw_weight, pw_weight, pw_bias,
                             *, block_b=1):
    """x: (B, T, D) f32.  dw_weight: (D, 1, K) (PyTorch grouped Conv1d layout),
    pw_weight: (D, D), pw_bias: (D,).  Returns (B, T, D) f32."""
    B, T, D = x.shape
    K = dw_weight.shape[-1]
    assert B % block_b == 0

    # Weight relayout (tiny, one-time, plain JAX):
    dw = jnp.transpose(dw_weight.reshape(D, K), (1, 0)).astype(jnp.float32)  # (K, D)
    pw = jnp.transpose(pw_weight, (1, 0)).astype(jnp.float32)                # (D, D)
    pb = pw_bias.reshape(1, D).astype(jnp.float32)
    g = ln_gamma.reshape(1, D).astype(jnp.float32)
    bt = ln_beta.reshape(1, D).astype(jnp.float32)

    return pl.pallas_call(
        dsconv_kernel,
        out_shape=jax.ShapeDtypeStruct((B, T, D), jnp.float32),
        grid_spec=pltpu.PrefetchScalarGridSpec(
            num_scalar_prefetch=0,
            grid=(B // block_b,),
            in_specs=[
                pl.BlockSpec((block_b, T, D), lambda i: (i, 0, 0)),
                pl.BlockSpec((1, D), lambda i: (0, 0)),
                pl.BlockSpec((1, D), lambda i: (0, 0)),
                pl.BlockSpec((K, D), lambda i: (0, 0)),
                pl.BlockSpec((D, D), lambda i: (0, 0)),
                pl.BlockSpec((1, D), lambda i: (0, 0)),
            ],
            out_specs=pl.BlockSpec((block_b, T, D), lambda i: (i, 0, 0)),
        ),
        compiler_params=pltpu.CompilerParams(
            dimension_semantics=("parallel",)),
    )(x.astype(jnp.float32), g, bt, dw, pw, pb)


def ref_forward(x, ln_gamma, ln_beta, dw_weight, pw_weight, pw_bias):
    """Pure-JAX reference mirroring the PyTorch forward (eval mode)."""
    B, T, D = x.shape
    K = dw_weight.shape[-1]
    mean = jnp.mean(x, axis=-1, keepdims=True)
    var = jnp.mean((x - mean) ** 2, axis=-1, keepdims=True)
    xln = (x - mean) * jax.lax.rsqrt(var + LN_EPS) * ln_gamma + ln_beta
    # depthwise conv along T (groups = D, no bias)
    x_ncw = jnp.transpose(xln, (0, 2, 1))                    # (B, D, T)
    y = jax.lax.conv_general_dilated(
        x_ncw, dw_weight, window_strides=(1,),
        padding=((K // 2, K // 2),),
        dimension_numbers=("NCH", "OIH", "NCH"),
        feature_group_count=D)
    y = jnp.transpose(y, (0, 2, 1))                          # (B, T, D)
    z = y @ pw_weight.T + pw_bias
    z = jnp.where(z > 0.0, z, LEAKY_SLOPE * z)
    return z + x                                             # dropout = identity


if __name__ == "__main__":
    # Small shapes consistent with the module's forward: (batch, text_len, input_dim)
    B, T, D, K = 2, 16, 128, 5
    P_DROPOUT = 0.1   # inference: identity

    key = jax.random.PRNGKey(0)
    kx, kg, kb, kdw, kpw, kpb = jax.random.split(key, 6)

    x = jax.random.normal(kx, (B, T, D), dtype=jnp.float32)
    ln_gamma = 1.0 + 0.1 * jax.random.normal(kg, (D,), dtype=jnp.float32)
    ln_beta = 0.1 * jax.random.normal(kb, (D,), dtype=jnp.float32)
    # depthwise Conv1d(D, D, K, groups=D, bias=False): weight (D, 1, K)
    dw_weight = 0.1 * jax.random.normal(kdw, (D, 1, K), dtype=jnp.float32)
    # pointwise Linear(D, D): weight (D, D), bias (D,)
    pw_weight = 0.05 * jax.random.normal(kpw, (D, D), dtype=jnp.float32)
    pw_bias = 0.05 * jax.random.normal(kpb, (D,), dtype=jnp.float32)

    out = depthwise_separable_conv(x, ln_gamma, ln_beta,
                                   dw_weight, pw_weight, pw_bias)
    out = jax.block_until_ready(out)

    ref = jax.block_until_ready(
        ref_forward(x, ln_gamma, ln_beta, dw_weight, pw_weight, pw_bias))
    assert out.shape == (B, T, D)
    assert jnp.allclose(out, ref, atol=1e-4, rtol=1e-4), \
        float(jnp.max(jnp.abs(out - ref)))

    print("KERNEL_OK")
</pallas_src>

<mosaic_0001>
module attributes {stable_mosaic.version = 11 : i64} {
  func.func @dsconv_kernel(%arg0: i32, %arg1: memref<1x16x128xf32, #tpu.memory_space<vmem>>, %arg2: memref<1x128xf32, #tpu.memory_space<vmem>>, %arg3: memref<1x128xf32, #tpu.memory_space<vmem>>, %arg4: memref<5x128xf32, #tpu.memory_space<vmem>>, %arg5: memref<128x128xf32, #tpu.memory_space<vmem>>, %arg6: memref<1x128xf32, #tpu.memory_space<vmem>>, %arg7: memref<1x16x128xf32, #tpu.memory_space<vmem>>) attributes {dimension_semantics = [#tpu.dimension_semantics<parallel>], iteration_bounds = array<i64: 2>, scalar_prefetch = 0 : i64, scratch_operands = 0 : i64, tpu.core_type = #tpu.core_type<tc>, window_params = [{transform_indices = @transform_0, window_bounds = array<i64: 1, 16, 128>}, {pipeline_mode = #tpu.pipeline_mode<synchronous>, transform_indices = @transform_1, window_bounds = array<i64: 1, 128>}, {pipeline_mode = #tpu.pipeline_mode<synchronous>, transform_indices = @transform_2, window_bounds = array<i64: 1, 128>}, {pipeline_mode = #tpu.pipeline_mode<synchronous>, transform_indices = @transform_3, window_bounds = array<i64: 5, 128>}, {pipeline_mode = #tpu.pipeline_mode<synchronous>, transform_indices = @transform_4, window_bounds = array<i64: 128, 128>}, {pipeline_mode = #tpu.pipeline_mode<synchronous>, transform_indices = @transform_5, window_bounds = array<i64: 1, 128>}, {transform_indices = @transform_6, window_bounds = array<i64: 1, 16, 128>}]} {
    %c0 = arith.constant 0 : index
    %c0_0 = arith.constant 0 : index
    %c0_1 = arith.constant 0 : index
    %0 = vector.load %arg1[%c0, %c0_0, %c0_1] : memref<1x16x128xf32, #tpu.memory_space<vmem>>, vector<1x16x128xf32>
    %cst = arith.constant dense<0.000000e+00> : vector<1x16xf32>
    %1 = vector.multi_reduction <add>, %0, %cst [2] : vector<1x16x128xf32> to vector<1x16xf32>
    %2 = vector.shape_cast %1 : vector<1x16xf32> to vector<1x16x1xf32>
    %cst_2 = arith.constant 1.280000e+02 : f32
    %3 = vector.broadcast %cst_2 : f32 to vector<1x16x1xf32>
    %4 = arith.divf %2, %3 : vector<1x16x1xf32>
    %5 = vector.broadcast %4 : vector<1x16x1xf32> to vector<1x16x128xf32>
    %6 = arith.subf %0, %5 : vector<1x16x128xf32>
    %7 = arith.mulf %6, %6 : vector<1x16x128xf32>
    %cst_3 = arith.constant dense<0.000000e+00> : vector<1x16xf32>
    %8 = vector.multi_reduction <add>, %7, %cst_3 [2] : vector<1x16x128xf32> to vector<1x16xf32>
    %9 = vector.shape_cast %8 : vector<1x16xf32> to vector<1x16x1xf32>
    %cst_4 = arith.constant 1.280000e+02 : f32
    %10 = vector.broadcast %cst_4 : f32 to vector<1x16x1xf32>
    %11 = arith.divf %9, %10 : vector<1x16x1xf32>
    %cst_5 = arith.constant 9.99999974E-6 : f32
    %12 = vector.broadcast %cst_5 : f32 to vector<1x16x1xf32>
    %13 = arith.addf %11, %12 : vector<1x16x1xf32>
    %14 = math.rsqrt %13 : vector<1x16x1xf32>
    %15 = vector.broadcast %14 : vector<1x16x1xf32> to vector<1x16x128xf32>
    %16 = arith.mulf %6, %15 : vector<1x16x128xf32>
    %c0_6 = arith.constant 0 : index
    %c0_7 = arith.constant 0 : index
    %17 = vector.load %arg2[%c0_6, %c0_7] : memref<1x128xf32, #tpu.memory_space<vmem>>, vector<1x128xf32>
    %18 = vector.shape_cast %17 : vector<1x128xf32> to vector<128xf32>
    %19 = vector.shape_cast %18 : vector<128xf32> to vector<1x1x128xf32>
    %20 = vector.broadcast %19 : vector<1x1x128xf32> to vector<1x16x128xf32>
    %21 = arith.mulf %16, %20 : vector<1x16x128xf32>
    %c0_8 = arith.constant 0 : index
    %c0_9 = arith.constant 0 : index
    %22 = vector.load %arg3[%c0_8, %c0_9] : memref<1x128xf32, #tpu.memory_space<vmem>>, vector<1x128xf32>
    %23 = vector.shape_cast %22 : vector<1x128xf32> to vector<128xf32>
    %24 = vector.shape_cast %23 : vector<128xf32> to vector<1x1x128xf32>
    %25 = vector.broadcast %24 : vector<1x1x128xf32> to vector<1x16x128xf32>
    %26 = arith.addf %21, %25 : vector<1x16x128xf32>
    %cst_10 = arith.constant 0.000000e+00 : f32
    %27 = vector.broadcast %cst_10 : f32 to vector<1x2x128xf32>
    %28 = tpu.concatenate %27, %26, %27 in 1 : vector<1x2x128xf32>, vector<1x16x128xf32>, vector<1x2x128xf32> -> vector<1x20x128xf32>
    %29 = vector.extract_strided_slice %28 {offsets = [0, 0, 0], sizes = [1, 16, 128], strides = [1, 1, 1]} : vector<1x20x128xf32> to vector<1x16x128xf32>
    %c0_11 = arith.constant 0 : index
    %c0_12 = arith.constant 0 : index
    %30 = vector.load %arg4[%c0_11, %c0_12] : memref<5x128xf32, #tpu.memory_space<vmem>>, vector<1x128xf32>
    %31 = vector.shape_cast %30 : vector<1x128xf32> to vector<128xf32>
    %32 = vector.shape_cast %31 : vector<128xf32> to vector<1x1x128xf32>
    %33 = vector.broadcast %32 : vector<1x1x128xf32> to vector<1x16x128xf32>
    %34 = arith.mulf %29, %33 : vector<1x16x128xf32>
    %35 = vector.extract_strided_slice %28 {offsets = [0, 1, 0], sizes = [1, 16, 128], strides = [1, 1, 1]} : vector<1x20x128xf32> to vector<1x16x128xf32>
    %c1 = arith.constant 1 : index
    %c0_13 = arith.constant 0 : index
    %36 = vector.load %arg4[%c1, %c0_13] : memref<5x128xf32, #tpu.memory_space<vmem>>, vector<1x128xf32>
    %37 = vector.shape_cast %36 : vector<1x128xf32> to vector<128xf32>
    %38 = vector.shape_cast %37 : vector<128xf32> to vector<1x1x128xf32>
    %39 = vector.broadcast %38 : vector<1x1x128xf32> to vector<1x16x128xf32>
    %40 = arith.mulf %35, %39 : vector<1x16x128xf32>
    %41 = arith.addf %34, %40 : vector<1x16x128xf32>
    %42 = vector.extract_strided_slice %28 {offsets = [0, 2, 0], sizes = [1, 16, 128], strides = [1, 1, 1]} : vector<1x20x128xf32> to vector<1x16x128xf32>
    %c2 = arith.constant 2 : index
    %c0_14 = arith.constant 0 : index
    %43 = vector.load %arg4[%c2, %c0_14] : memref<5x128xf32, #tpu.memory_space<vmem>>, vector<1x128xf32>
    %44 = vector.shape_cast %43 : vector<1x128xf32> to vector<128xf32>
    %45 = vector.shape_cast %44 : vector<128xf32> to vector<1x1x128xf32>
    %46 = vector.broadcast %45 : vector<1x1x128xf32> to vector<1x16x128xf32>
    %47 = arith.mulf %42, %46 : vector<1x16x128xf32>
    %48 = arith.addf %41, %47 : vector<1x16x128xf32>
    %49 = vector.extract_strided_slice %28 {offsets = [0, 3, 0], sizes = [1, 16, 128], strides = [1, 1, 1]} : vector<1x20x128xf32> to vector<1x16x128xf32>
    %c3 = arith.constant 3 : index
    %c0_15 = arith.constant 0 : index
    %50 = vector.load %arg4[%c3, %c0_15] : memref<5x128xf32, #tpu.memory_space<vmem>>, vector<1x128xf32>
    %51 = vector.shape_cast %50 : vector<1x128xf32> to vector<128xf32>
    %52 = vector.shape_cast %51 : vector<128xf32> to vector<1x1x128xf32>
    %53 = vector.broadcast %52 : vector<1x1x128xf32> to vector<1x16x128xf32>
    %54 = arith.mulf %49, %53 : vector<1x16x128xf32>
    %55 = arith.addf %48, %54 : vector<1x16x128xf32>
    %56 = vector.extract_strided_slice %28 {offsets = [0, 4, 0], sizes = [1, 16, 128], strides = [1, 1, 1]} : vector<1x20x128xf32> to vector<1x16x128xf32>
    %c4 = arith.constant 4 : index
    %c0_16 = arith.constant 0 : index
    %57 = vector.load %arg4[%c4, %c0_16] : memref<5x128xf32, #tpu.memory_space<vmem>>, vector<1x128xf32>
    %58 = vector.shape_cast %57 : vector<1x128xf32> to vector<128xf32>
    %59 = vector.shape_cast %58 : vector<128xf32> to vector<1x1x128xf32>
    %60 = vector.broadcast %59 : vector<1x1x128xf32> to vector<1x16x128xf32>
    %61 = arith.mulf %56, %60 : vector<1x16x128xf32>
    %62 = arith.addf %55, %61 : vector<1x16x128xf32>
    %63 = vector.shape_cast %62 : vector<1x16x128xf32> to vector<16x128xf32>
    %c0_17 = arith.constant 0 : index
    %c0_18 = arith.constant 0 : index
    %64 = vector.load %arg5[%c0_17, %c0_18] : memref<128x128xf32, #tpu.memory_space<vmem>>, vector<128x128xf32>
    %cst_19 = arith.constant dense<0.000000e+00> : vector<16x128xf32>
    %65 = tpu.matmul %63, %64, %cst_19 {dimension_numbers = #tpu.dot_dimension_numbers<[1], [0], [0], [1], [0, 0, 1, 1], [], []>} : vector<16x128xf32>, vector<128x128xf32>, vector<16x128xf32> -> vector<16x128xf32>
    %c0_20 = arith.constant 0 : index
    %c0_21 = arith.constant 0 : index
    %66 = vector.load %arg6[%c0_20, %c0_21] : memref<1x128xf32, #tpu.memory_space<vmem>>, vector<1x128xf32>
    %67 = vector.shape_cast %66 : vector<1x128xf32> to vector<128xf32>
    %68 = vector.shape_cast %67 : vector<128xf32> to vector<1x128xf32>
    %69 = vector.broadcast %68 : vector<1x128xf32> to vector<16x128xf32>
    %70 = arith.addf %65, %69 : vector<16x128xf32>
    %71 = vector.shape_cast %70 : vector<16x128xf32> to vector<1x16x128xf32>
    %cst_22 = arith.constant 0.000000e+00 : f32
    %72 = vector.broadcast %cst_22 : f32 to vector<1x16x128xf32>
    %73 = arith.cmpf ogt, %71, %72 : vector<1x16x128xf32>
    %cst_23 = arith.constant 0.00999999977 : f32
    %74 = vector.broadcast %cst_23 : f32 to vector<1x16x128xf32>
    %75 = arith.mulf %74, %71 : vector<1x16x128xf32>
    %76 = arith.select %73, %71, %75 : vector<1x16x128xi1>, vector<1x16x128xf32>
    %77 = arith.addf %76, %0 : vector<1x16x128xf32>
    %c0_24 = arith.constant 0 : index
    %c0_25 = arith.constant 0 : index
    %c0_26 = arith.constant 0 : index
    %78 = vector.load %arg7[%c0_24, %c0_25, %c0_26] : memref<1x16x128xf32, #tpu.memory_space<vmem>>, vector<1x16x128xf32>
    tpu.vector_store %arg7[%c0_24, %c0_25, %c0_26], %77 {strides = array<i32>} : memref<1x16x128xf32, #tpu.memory_space<vmem>>, vector<1x16x128xf32>,
    return
  }
  func.func @transform_0(%arg0: i32) -> (i32, i32, i32) {
    %c0_i32 = arith.constant 0 : i32
    %c0_i32_0 = arith.constant 0 : i32
    %c0_i32_1 = arith.constant 0 : i32
    return %arg0, %c0_i32, %c0_i32_0 : i32, i32, i32
  }
  func.func @transform_1(%arg0: i32) -> (i32, i32) {
    %c0_i32 = arith.constant 0 : i32
    %c0_i32_0 = arith.constant 0 : i32
    %c0_i32_1 = arith.constant 0 : i32
    return %c0_i32, %c0_i32_0 : i32, i32
  }
  func.func @transform_2(%arg0: i32) -> (i32, i32) {
    %c0_i32 = arith.constant 0 : i32
    %c0_i32_0 = arith.constant 0 : i32
    %c0_i32_1 = arith.constant 0 : i32
    return %c0_i32, %c0_i32_0 : i32, i32
  }
  func.func @transform_3(%arg0: i32) -> (i32, i32) {
    %c0_i32 = arith.constant 0 : i32
    %c0_i32_0 = arith.constant 0 : i32
    %c0_i32_1 = arith.constant 0 : i32
    return %c0_i32, %c0_i32_0 : i32, i32
  }
  func.func @transform_4(%arg0: i32) -> (i32, i32) {
    %c0_i32 = arith.constant 0 : i32
    %c0_i32_0 = arith.constant 0 : i32
    %c0_i32_1 = arith.constant 0 : i32
    return %c0_i32, %c0_i32_0 : i32, i32
  }
  func.func @transform_5(%arg0: i32) -> (i32, i32) {
    %c0_i32 = arith.constant 0 : i32
    %c0_i32_0 = arith.constant 0 : i32
    %c0_i32_1 = arith.constant 0 : i32
    return %c0_i32, %c0_i32_0 : i32, i32
  }
  func.func @transform_6(%arg0: i32) -> (i32, i32, i32) {
    %c0_i32 = arith.constant 0 : i32
    %c0_i32_0 = arith.constant 0 : i32
    %c0_i32_1 = arith.constant 0 : i32
    return %arg0, %c0_i32, %c0_i32_0 : i32, i32, i32
  }
}

</mosaic_0001>

<llo_original>
// kernel: tpu_custom_call.1
$region0: #{tpu_custom_call.1}
  #allocation0 [shape = 'u32[]', space=smem, size = 0x4, offset = 0x4, fixed_abs, tag = 'smem constant byte address 0x4 - core index']
  #allocation1 [shape = 'u32[72,128]{1,0:T(1,128)}', space=vmem, size = 0x9000, scoped, tag = 'internal scratch']
  %s0 = inlined_call_operand.hbm [shape: f32[2,16,128], index: 0, kind: input, shape index: {}]
  %s1 = inlined_call_operand.hbm [shape: f32[1,128], index: 1, kind: input, shape index: {}]
  %s2 = inlined_call_operand.vmem [shape: f32[1,128], index: 2, kind: input, shape index: {}]
  %s3 = inlined_call_operand.hbm [shape: f32[5,128], index: 3, kind: input, shape index: {}]
  %s4 = inlined_call_operand.hbm [shape: f32[128,128], index: 4, kind: input, shape index: {}]
  %s5 = inlined_call_operand.vmem [shape: f32[1,128], index: 5, kind: input, shape index: {}]
  %s6 = inlined_call_operand.hbm [shape: f32[2,16,128], index: 6, kind: output, shape index: {}]
  %s7 = sld [smem:[#allocation0]]
  $region73: #{tpu_custom_call.1} parent=0
    _
  %s9 = ssub.s32 1, %s7
  %s10 = scalar_select 0, %s9, %s7
  $region1: #{tpu_custom_call.1} parent=0
    #allocation2 [shape = 'u8[16384]{0}', space=vmem, size = 0x4000, scoped, tag = 'input window, operand 0']
    #allocation3 [shape = 's32[2]{0}', space=sflag, size = 0x8, scoped, tag = 'scoped memory for tpu_custom_call.1']
    #allocation4 [shape = 's32[2]{0}', space=sflag, size = 0x8, scoped, tag = 'scoped memory for tpu_custom_call.1']
    #allocation5 [shape = 'u8[512]{0}', space=vmem, size = 0x400, scoped, tag = 'input window, operand 1, single buffered']
    #allocation6 [shape = 's32[1]{0}', space=sflag, size = 0x4, scoped, tag = 'scoped memory for tpu_custom_call.1']
    #allocation7 [shape = 'u8[4096]{0}', space=vmem, size = 0x1000, scoped, tag = 'input window, operand 3, single buffered']
    #allocation8 [shape = 'u8[65536]{0}', space=vmem, size = 0x10000, scoped, tag = 'input window, operand 4, single buffered']
    #allocation9 [shape = 's32[1]{0}', space=sflag, size = 0x4, scoped, tag = 'scoped memory for tpu_custom_call.1']
    #allocation10 [shape = 'u8[16384]{0}', space=vmem, size = 0x4000, scoped, tag = 'output window, operand 0']
    %11 = vsyncpa [#allocation3], 0
    %s12 = scalar_lea.sflag [#allocation3], 1
    %13 = vsyncpa %s12, 0
    %14 = vsyncpa [#allocation6], 0
    %15 = vsyncpa [#allocation9], 0
    %16 = vsyncpa [#allocation4], 0
    %s17 = scalar_lea.sflag [#allocation4], 1
    %18 = vsyncpa %s17, 0
    loop: start=0, step=1, limit=4
    $region2: #{tpu_custom_call.1} parent=1 // loop_pre_header
      _
    $region3: #{tpu_custom_call.1} parent=1 // loop_header
      %s20 = sphi 0, %s24
      %p21 = scmp.ge.s32.totalorder %s20, 4
      %s30 = sphi 0, %s32
      %s33 = sphi 0, %s30
      %s34 = sphi 0, %s33
      %s50 = sphi 0, %s34
      %s54 = sphi 0, %s54
      %s56 = sphi 0, %s54
      %s57 = sphi 0, %s56
      %s71 = sphi 0, %s57
      %s75 = sphi 0, %s75
      %s77 = sphi 0, %s75
      %s78 = sphi 0, %s77
      %s92 = sphi 0, %s78
      %s96 = sphi 0, %s96
      %s98 = sphi 0, %s96
      %s99 = sphi 0, %s98
      %s113 = sphi 0, %s99
      %s117 = sphi 0, %s117
      %s119 = sphi 0, %s117
      %s120 = sphi 0, %s119
      %s134 = sphi 0, %s120
      %s138 = sphi 0, %s138
      %s140 = sphi 0, %s138
      %s141 = sphi 0, %s140
      %s155 = sphi 0, %s141
      %s161 = sphi 0, %s163
      %s164 = sphi 0, %s161
      %s165 = sphi 0, %s164
      %s181 = sphi 0, %s165
    $region4: #{tpu_custom_call.1} parent=1 // loop_header_branch
      %23 = sbr.rel (%p21) target = $region8
    $region5: #{tpu_custom_call.1} parent=1 // loop_body
      %s25 = ssub.s32 %s20, 1
      %s26 = ssub.s32 %s20, 2
      %s27 = sadd.s32 %s20, 1
      %s28 = ssub.s32 %s20, %s27
      %p29 = scmp.eq.s32.totalorder %s28, 0
      %s31 = sadd.s32 %s30, 1
      %s32 = scalar_select %p29, %s30, %s31
      %p35 = pneg %p29
      %p36 = scmp.eq.s32.totalorder %s20, 1
      %p37 = por %p35, %p36
      %p38 = scmp.ne.s32.totalorder %s30, %s33
      %p39 = scmp.eq.s32.totalorder %s20, 0
      %p40 = por %p38, %p39
      %p41 = scmp.ne.s32.totalorder %s30, %s33
      %p42 = scmp.eq.s32.totalorder %s25, 1
      %p43 = por %p41, %p42
      %p44 = scmp.ne.s32.totalorder %s33, %s34
      %p45 = scmp.eq.s32.totalorder %s25, 0
      %p46 = por %p44, %p45
      %p47 = scmp.ne.s32.totalorder %s33, %s34
      %p48 = scmp.eq.s32.totalorder %s26, 1
      %p49 = por %p47, %p48
      %p51 = scmp.ne.s32.totalorder %s34, %s50
      %p52 = scmp.eq.s32.totalorder %s26, 0
      %p53 = por %p51, %p52
      %s55 = sadd.s32 %s54, 1
      %p58 = scmp.eq.s32.totalorder %s20, 1
      %p59 = scmp.ne.s32.totalorder %s54, %s56
      %p60 = scmp.eq.s32.totalorder %s20, 0
      %p61 = por %p59, %p60
      %p62 = scmp.ne.s32.totalorder %s54, %s56
      %p63 = scmp.eq.s32.totalorder %s25, 1
      %p64 = por %p62, %p63
      %p65 = scmp.ne.s32.totalorder %s56, %s57
      %p66 = scmp.eq.s32.totalorder %s25, 0
      %p67 = por %p65, %p66
      %p68 = scmp.ne.s32.totalorder %s56, %s57
      %p69 = scmp.eq.s32.totalorder %s26, 1
      %p70 = por %p68, %p69
      %p72 = scmp.ne.s32.totalorder %s57, %s71
      %p73 = scmp.eq.s32.totalorder %s26, 0
      %p74 = por %p72, %p73
      %s76 = sadd.s32 %s75, 1
      %p79 = scmp.eq.s32.totalorder %s20, 1
      %p80 = scmp.ne.s32.totalorder %s75, %s77
      %p81 = scmp.eq.s32.totalorder %s20, 0
      %p82 = por %p80, %p81
      %p83 = scmp.ne.s32.totalorder %s75, %s77
      %p84 = scmp.eq.s32.totalorder %s25, 1
      %p85 = por %p83, %p84
      %p86 = scmp.ne.s32.totalorder %s77, %s78
      %p87 = scmp.eq.s32.totalorder %s25, 0
      %p88 = por %p86, %p87
      %p89 = scmp.ne.s32.totalorder %s77, %s78
      %p90 = scmp.eq.s32.totalorder %s26, 1
      %p91 = por %p89, %p90
      %p93 = scmp.ne.s32.totalorder %s78, %s92
      %p94 = scmp.eq.s32.totalorder %s26, 0
      %p95 = por %p93, %p94
      %s97 = sadd.s32 %s96, 1
      %p100 = scmp.eq.s32.totalorder %s20, 1
      %p101 = scmp.ne.s32.totalorder %s96, %s98
      %p102 = scmp.eq.s32.totalorder %s20, 0
      %p103 = por %p101, %p102
      %p104 = scmp.ne.s32.totalorder %s96, %s98
      %p105 = scmp.eq.s32.totalorder %s25, 1
      %p106 = por %p104, %p105
      %p107 = scmp.ne.s32.totalorder %s98, %s99
      %p108 = scmp.eq.s32.totalorder %s25, 0
      %p109 = por %p107, %p108
      %p110 = scmp.ne.s32.totalorder %s98, %s99
      %p111 = scmp.eq.s32.totalorder %s26, 1
      %p112 = por %p110, %p111
      %p114 = scmp.ne.s32.totalorder %s99, %s113
      %p115 = scmp.eq.s32.totalorder %s26, 0
      %p116 = por %p114, %p115
      %s118 = sadd.s32 %s117, 1
      %p121 = scmp.eq.s32.totalorder %s20, 1
      %p122 = scmp.ne.s32.totalorder %s117, %s119
      %p123 = scmp.eq.s32.totalorder %s20, 0
      %p124 = por %p122, %p123
      %p125 = scmp.ne.s32.totalorder %s117, %s119
      %p126 = scmp.eq.s32.totalorder %s25, 1
      %p127 = por %p125, %p126
      %p128 = scmp.ne.s32.totalorder %s119, %s120
      %p129 = scmp.eq.s32.totalorder %s25, 0
      %p130 = por %p128, %p129
      %p131 = scmp.ne.s32.totalorder %s119, %s120
      %p132 = scmp.eq.s32.totalorder %s26, 1
      %p133 = por %p131, %p132
      %p135 = scmp.ne.s32.totalorder %s120, %s134
      %p136 = scmp.eq.s32.totalorder %s26, 0
      %p137 = por %p135, %p136
      %s139 = sadd.s32 %s138, 1
      %p142 = scmp.eq.s32.totalorder %s20, 1
      %p143 = scmp.ne.s32.totalorder %s138, %s140
      %p144 = scmp.eq.s32.totalorder %s20, 0
      %p145 = por %p143, %p144
      %p146 = scmp.ne.s32.totalorder %s138, %s140
      %p147 = scmp.eq.s32.totalorder %s25, 1
      %p148 = por %p146, %p147
      %p149 = scmp.ne.s32.totalorder %s140, %s141
      %p150 = scmp.eq.s32.totalorder %s25, 0
      %p151 = por %p149, %p150
      %p152 = scmp.ne.s32.totalorder %s140, %s141
      %p153 = scmp.eq.s32.totalorder %s26, 1
      %p154 = por %p152, %p153
      %p156 = scmp.ne.s32.totalorder %s141, %s155
      %p157 = scmp.eq.s32.totalorder %s26, 0
      %p158 = por %p156, %p157
      %s159 = ssub.s32 %s20, %s27
      %p160 = scmp.eq.s32.totalorder %s159, 0
      %s162 = sadd.s32 %s161, 1
      %s163 = scalar_select %p160, %s161, %s162
      %p166 = pneg %p160
      %p167 = scmp.eq.s32.totalorder %s20, 1
      %p168 = por %p166, %p167
      %p169 = scmp.ne.s32.totalorder %s161, %s164
      %p170 = scmp.eq.s32.totalorder %s20, 0
      %p171 = por %p169, %p170
      %p172 = scmp.ne.s32.totalorder %s161, %s164
      %p173 = scmp.eq.s32.totalorder %s25, 1
      %p174 = por %p172, %p173
      %p175 = scmp.ne.s32.totalorder %s164, %s165
      %p176 = scmp.eq.s32.totalorder %s25, 0
      %p177 = por %p175, %p176
      %p178 = scmp.ne.s32.totalorder %s164, %s165
      %p179 = scmp.eq.s32.totalorder %s26, 1
      %p180 = por %p178, %p179
      %p182 = scmp.ne.s32.totalorder %s165, %s181
      %p183 = scmp.eq.s32.totalorder %s26, 0
      %p184 = por %p182, %p183
      %p185 = scmp.le.s32.totalorder 1, %s20
      %p186 = scmp.lt.s32.totalorder %s20, 3
      %p187 = pnand %p185, %p186
      %p188 = pneg %p187
      // Predicated region
      $region9: #{tpu_custom_call.1} parent=5 // pred_check
        _
      $region10: #{tpu_custom_call.1} parent=5 // pred_check_branch
        %190 = sbr.rel (%p187) target = $region12
      $region11: #{tpu_custom_call.1} parent=5 // pred_region
        %s191 = ssub.s32 %s20, 1
        // Predicated region
        $region13: #{tpu_custom_call.1} parent=11 // pred_check
          %p192 = pneg %p67
        $region14: #{tpu_custom_call.1} parent=11 // pred_check_branch
          %194 = sbr.rel (%p192) target = $region16
        $region15: #{tpu_custom_call.1} parent=11 // pred_region
          %196 = vsyncadd [#allocation6], 0
          %s198 = sshll.u32 %s1, 4
          %s199 = int_to_ptr.hbm [resolvable:$true] %s198
          %s200 = sshll.u32 [#allocation5], 4
          %s201 = int_to_ptr.vmem [resolvable:$true] %s200
          %203 = dma.hbm_to_vmem [thread:$0]  %s199, 16, %s201, [#allocation6]
        $region16: #{tpu_custom_call.1} parent=11 // pred_fallthru
          _
        // Predicated region
        $region17: #{tpu_custom_call.1} parent=11 // pred_check
          %p204 = pneg %p88
        $region18: #{tpu_custom_call.1} parent=11 // pred_check_branch
          %206 = sbr.rel (%p204) target = $region20
        $region19: #{tpu_custom_call.1} parent=11 // pred_region
          _
        $region20: #{tpu_custom_call.1} parent=11 // pred_fallthru
          _
        // Predicated region
        $region21: #{tpu_custom_call.1} parent=11 // pred_check
          %p207 = pneg %p109
        $region22: #{tpu_custom_call.1} parent=11 // pred_check_branch
          %209 = sbr.rel (%p207) target = $region24
        $region23: #{tpu_custom_call.1} parent=11 // pred_region
          %211 = vsyncadd [#allocation6], 0
          %s213 = sshll.u32 %s3, 4
          %s214 = int_to_ptr.hbm [resolvable:$true] %s213
          %s215 = sshll.u32 [#allocation7], 4
          %s216 = int_to_ptr.vmem [resolvable:$true] %s215
          %218 = dma.hbm_to_vmem [thread:$0]  %s214, 128, %s216, [#allocation6]
        $region24: #{tpu_custom_call.1} parent=11 // pred_fallthru
          _
        // Predicated region
        $region25: #{tpu_custom_call.1} parent=11 // pred_check
          %p219 = pneg %p130
        $region26: #{tpu_custom_call.1} parent=11 // pred_check_branch
          %221 = sbr.rel (%p219) target = $region28
        $region27: #{tpu_custom_call.1} parent=11 // pred_region
          %223 = vsyncadd [#allocation9], 0
          %s224 = sshll.u32 %s4, 4
          %s225 = int_to_ptr.hbm [resolvable:$true] %s224
          %s226 = sshll.u32 [#allocation8], 4
          %s227 = int_to_ptr.vmem [resolvable:$true] %s226
          %232 = dma.hbm_to_vmem [thread:$0]  %s225, 2048, %s227, [#allocation9], 128, 128, 8
        $region28: #{tpu_custom_call.1} parent=11 // pred_fallthru
          _
        // Predicated region
        $region29: #{tpu_custom_call.1} parent=11 // pred_check
          %p233 = pneg %p151
        $region30: #{tpu_custom_call.1} parent=11 // pred_check_branch
          %235 = sbr.rel (%p233) target = $region32
        $region31: #{tpu_custom_call.1} parent=11 // pred_region
          _
        $region32: #{tpu_custom_call.1} parent=11 // pred_fallthru
          _
      $region12: #{tpu_custom_call.1} parent=5 // pred_fallthru
        _
      %p236 = scmp.lt.s32.totalorder %s20, 2
      // Predicated region
      $region33: #{tpu_custom_call.1} parent=5 // pred_check
        %p237 = pneg %p236
      $region34: #{tpu_custom_call.1} parent=5 // pred_check_branch
        %239 = sbr.rel (%p237) target = $region36
      $region35: #{tpu_custom_call.1} parent=5 // pred_region
        // Predicated region
        $region37: #{tpu_custom_call.1} parent=35 // pred_check
          %p240 = pneg %p40
        $region38: #{tpu_custom_call.1} parent=35 // pred_check_branch
          %242 = sbr.rel (%p240) target = $region40
        $region39: #{tpu_custom_call.1} parent=35 // pred_region
          %s243 = sand.u32 %s30, 1
          %s244 = scalar_lea.sflag [#allocation3], %s243
          %s245 = sand.u32 %s30, 1
          %s246 = smul.addr %s245, 16
          %s247 = scalar_lea.vmem [#allocation2], %s246
          %249 = vsyncadd %s244, 0
          %s250 = smul.addr %s20, 2
          %s251 = smul.addr %s250, 8
          %s252 = scalar_lea.hbm %s0, %s251
          %s253 = sshll.u32 %s252, 4
          %s254 = int_to_ptr.hbm [resolvable:$true] %s253
          %s255 = sshll.u32 %s247, 4
          %s256 = int_to_ptr.vmem [resolvable:$true] %s255
          %261 = dma.hbm_to_vmem [thread:$0]  %s254, 256, %s256, %s244, 128, 128, 8
        $region40: #{tpu_custom_call.1} parent=35 // pred_fallthru
          _
      $region36: #{tpu_custom_call.1} parent=5 // pred_fallthru
        _
      %p262 = scmp.le.s32.totalorder 1, %s20
      %p263 = scmp.lt.s32.totalorder %s20, 3
      %p264 = pnand %p262, %p263
      %p265 = pneg %p264
      // Predicated region
      $region41: #{tpu_custom_call.1} parent=5 // pred_check
        _
      $region42: #{tpu_custom_call.1} parent=5 // pred_check_branch
        %267 = sbr.rel (%p264) target = $region44
      $region43: #{tpu_custom_call.1} parent=5 // pred_region
        %s268 = ssub.s32 %s20, 1
        %s269 = sand.u32 %s33, 1
        %s270 = scalar_lea.sflag [#allocation3], %s269
        %s271 = sand.u32 %s33, 1
        %s272 = smul.addr %s271, 16
        %s273 = scalar_lea.vmem [#allocation2], %s272
        // Predicated region
        $region45: #{tpu_custom_call.1} parent=43 // pred_check
          %p274 = pneg %p46
        $region46: #{tpu_custom_call.1} parent=43 // pred_check_branch
          %276 = sbr.rel (%p274) target = $region48
        $region47: #{tpu_custom_call.1} parent=43 // pred_region
          %278 = dma.done %s270, 256
        $region48: #{tpu_custom_call.1} parent=43 // pred_fallthru
          _
        // Predicated region
        $region49: #{tpu_custom_call.1} parent=43 // pred_check
          %p279 = pneg %p67
        $region50: #{tpu_custom_call.1} parent=43 // pred_check_branch
          %281 = sbr.rel (%p279) target = $region52
        $region51: #{tpu_custom_call.1} parent=43 // pred_region
          %283 = dma.done [#allocation6], 16
        $region52: #{tpu_custom_call.1} parent=43 // pred_fallthru
          _
        // Predicated region
        $region53: #{tpu_custom_call.1} parent=43 // pred_check
          %p284 = pneg %p109
        $region54: #{tpu_custom_call.1} parent=43 // pred_check_branch
          %286 = sbr.rel (%p284) target = $region56
        $region55: #{tpu_custom_call.1} parent=43 // pred_region
          %288 = dma.done [#allocation6], 128
        $region56: #{tpu_custom_call.1} parent=43 // pred_fallthru
          _
        // Predicated region
        $region57: #{tpu_custom_call.1} parent=43 // pred_check
          %p289 = pneg %p130
        $region58: #{tpu_custom_call.1} parent=43 // pred_check_branch
          %291 = sbr.rel (%p289) target = $region60
        $region59: #{tpu_custom_call.1} parent=43 // pred_region
          %293 = dma.done [#allocation9], 2048
        $region60: #{tpu_custom_call.1} parent=43 // pred_fallthru
          _
        %s294 = sand.u32 %s33, 1
        %s295 = scalar_lea.sflag [#allocation3], %s294
        %s296 = sand.u32 %s33, 1
        %s297 = smul.addr %s296, 16
        %s298 = scalar_lea.vmem [#allocation2], %s297
        %p299 = pneg %p46
        %p300 = pneg %p43
        %p301 = pneg %p67
        %p302 = pneg %p64
        %p303 = pneg %p88
        %p304 = pneg %p85
        %p305 = pneg %p109
        %p306 = pneg %p106
        %p307 = pneg %p130
        %p308 = pneg %p127
        %p309 = pneg %p151
        %p310 = pneg %p148
        %p311 = pneg %p177
        %p312 = pneg %p174
        %s313 = sand.u32 %s164, 1
        %s314 = scalar_lea.sflag [#allocation4], %s313
        %s315 = sand.u32 %s164, 1
        %s316 = smul.addr %s315, 16
        %s317 = scalar_lea.vmem [#allocation10], %s316
        %v318 = vld [vmem:[%s273] sm:$0xff]
        %v319 = vld [vmem:[%s273 + $0x8] sm:$0xff]
        %320 = vadd.xlane.f32.xlu0 %v318
        %v321 = vpop.xlane.xlu0 %320
        %322 = vadd.xlane.f32.xlu0 %v319
        %v323 = vpop.xlane.xlu0 %322
        %v324 = vrcp.pop 128.0
        %v325 = vmul.f32 128.0, %v324
        %v326 = vsub.f32 1.0, %v325
        %v327 = vmul.f32 %v324, %v326
        %v328 = vadd.f32 %v324, %v327
        %vm329 = vweird.f32 %v324
        %v330 = vsel %vm329, %v324, %v328
        %v331 = vmul.f32 %v321, %v330
        %v332 = vmul.f32 %v323, %v330
        %v333 = vsub.f32 %v318, %v331
        %v334 = vsub.f32 %v319, %v332
        %v335 = vmul.f32 %v333, %v333
        %v336 = vmul.f32 %v334, %v334
        %337 = vadd.xlane.f32.xlu0 %v335
        %v338 = vpop.xlane.xlu0 %337
        %339 = vadd.xlane.f32.xlu0 %v336
        %v340 = vpop.xlane.xlu0 %339
        %v341 = vmul.f32 %v338, %v330
        %v342 = vmul.f32 %v340, %v330
        %v343 = vadd.f32 %v341, 1e-05
        %v344 = vadd.f32 %v342, 1e-05
        %v345 = vrsqrt.pop %v343
        %v346 = vmul.f32 %v345, %v343
        %v347 = vmul.f32 %v346, %v345
        %v348 = vmul.f32 0.5, %v347
        %v349 = vsub.f32 1.5, %v348
        %v350 = vmul.f32 %v345, %v349
        %vm351 = vweird.f32 %v343
        %vm352 = vweird.f32 %v345
        %vm353 = vmor %vm351, %vm352
        %v354 = vsel %vm353, %v345, %v350
        %v355 = vrsqrt.pop %v344
        %v356 = vmul.f32 %v355, %v344
        %v357 = vmul.f32 %v356, %v355
        %v358 = vmul.f32 0.5, %v357
        %v359 = vsub.f32 1.5, %v358
        %v360 = vmul.f32 %v355, %v359
        %vm361 = vweird.f32 %v344
        %vm362 = vweird.f32 %v355
        %vm363 = vmor %vm361, %vm362
        %v364 = vsel %vm363, %v355, %v360
        %v365 = vmul.f32 %v333, %v354
        %v366 = vmul.f32 %v334, %v364
        %v367 = vld [vmem:[#allocation5] sm:$0x1]
        %v369 = vperm.slane %v367, 0
        %v371 = vmul.f32 %v365, %v369
        %v372 = vmul.f32 %v366, %v369
        %v373 = vld [vmem:[%s2] sm:$0x1]
        %v375 = vperm.slane %v373, 0
        %v377 = vadd.f32 %v371, %v375
        %v378 = vadd.f32 %v372, %v375
        %vm381 = vcmask 1041408
        %v382 = vrot.slane %v377, 6
        %v383 = vrot.slane %v378, 6
        %v384 = vsel %vm381, %v382, %v383
        %v388 = vsel %vm381, 0.0, %v382
        %v389 = vsel %vm381, %v383, 0.0
        %v390 = vld [vmem:[#allocation7] sm:$0x1]
        %v391 = vperm.slane %v390, 0
        %v392 = vmul.f32 %v388, %v391
        %v393 = vmul.f32 %v384, %v391
        %v394 = vld [vmem:[#allocation7 + $0x1] sm:$0x1]
        %v395 = vperm.slane %v394, 0
        %v396 = vmul.f32 %v388, %v395
        %v397 = vmul.f32 %v384, %v395
        %v398 = vmul.f32 %v389, %v395
        %vm402 = vcmask 1046528
        %v403 = vrot.slane %v396, 1
        %v404 = vrot.slane %v397, 1
        %v405 = vsel %vm402, %v403, %v404
        %v406 = vrot.slane %v398, 1
        %v407 = vsel %vm402, %v404, %v406
        %v410 = vadd.f32 %v392, %v405
        %v411 = vadd.f32 %v393, %v407
        %v412 = vld [vmem:[#allocation7 + $0x2] sm:$0x1]
        %v413 = vperm.slane %v412, 0
        %v414 = vmul.f32 %v388, %v413
        %v415 = vmul.f32 %v384, %v413
        %v416 = vmul.f32 %v389, %v413
        %vm420 = vcmask 1045504
        %v421 = vrot.slane %v414, 2
        %v422 = vrot.slane %v415, 2
        %v423 = vsel %vm420, %v421, %v422
        %v424 = vrot.slane %v416, 2
        %v425 = vsel %vm420, %v422, %v424
        %v428 = vadd.f32 %v410, %v423
        %v429 = vadd.f32 %v411, %v425
        %v430 = vld [vmem:[#allocation7 + $0x3] sm:$0x1]
        %v431 = vperm.slane %v430, 0
        %v432 = vmul.f32 %v388, %v431
        %v433 = vmul.f32 %v384, %v431
        %v434 = vmul.f32 %v389, %v431
        %vm438 = vcmask 1044480
        %v439 = vrot.slane %v432, 3
        %v440 = vrot.slane %v433, 3
        %v441 = vsel %vm438, %v439, %v440
        %v442 = vrot.slane %v434, 3
        %v443 = vsel %vm438, %v440, %v442
        %v446 = vadd.f32 %v428, %v441
        %v447 = vadd.f32 %v429, %v443
        %v448 = vld [vmem:[#allocation7 + $0x4] sm:$0x1]
        %v449 = vperm.slane %v448, 0
        %v450 = vmul.f32 %v388, %v449
        %v451 = vmul.f32 %v384, %v449
        %v452 = vmul.f32 %v389, %v449
        %vm456 = vcmask 1043456
        %v457 = vrot.slane %v450, 4
        %v458 = vrot.slane %v451, 4
        %v459 = vsel %vm456, %v457, %v458
        %v460 = vrot.slane %v452, 4
        %v461 = vsel %vm456, %v458, %v460
        %v464 = vadd.f32 %v446, %v459
        %v465 = vadd.f32 %v447, %v461
        %v466 = vld [vmem:[#allocation8] sm:$0xff]
        %v467 = vld [vmem:[#allocation8 + $0x8] sm:$0xff]
        %v468 = vld [vmem:[#allocation8 + $0x10] sm:$0xff]
        %v469 = vld [vmem:[#allocation8 + $0x18] sm:$0xff]
        %v470 = vld [vmem:[#allocation8 + $0x20] sm:$0xff]
        %v471 = vld [vmem:[#allocation8 + $0x28] sm:$0xff]
        %v472 = vld [vmem:[#allocation8 + $0x30] sm:$0xff]
        %v473 = vld [vmem:[#allocation8 + $0x38] sm:$0xff]
        %v474 = vld [vmem:[#allocation8 + $0x40] sm:$0xff]
        %v475 = vld [vmem:[#allocation8 + $0x48] sm:$0xff]
        %v476 = vld [vmem:[#allocation8 + $0x50] sm:$0xff]
        %v477 = vld [vmem:[#allocation8 + $0x58] sm:$0xff]
        %v478 = vld [vmem:[#allocation8 + $0x60] sm:$0xff]
        %v479 = vld [vmem:[#allocation8 + $0x68] sm:$0xff]
        %v480 = vld [vmem:[#allocation8 + $0x70] sm:$0xff]
        %v481 = vld [vmem:[#allocation8 + $0x78] sm:$0xff]
        %v482 = vld [vmem:[%s5] sm:$0x1]
        %v484 = vperm.slane %v482, 0
        %486 = vmatpush.msra.mxu0 %v481
        %487 = vmatpush.msra.mxu0 %v480
        %488 = vmatpush.msra.mxu0 %v479
        %489 = vmatpush.msra.mxu0 %v478
        %490 = vmatpush.msra.mxu0 %v477
        %491 = vmatpush.msra.mxu0 %v476
        %492 = vmatpush.msra.mxu0 %v475
        %493 = vmatpush.msra.mxu0 %v474
        %494 = vmatpush.msra.mxu0 %v473
        %495 = vmatpush.msra.mxu0 %v472
        %496 = vmatpush.msra.mxu0 %v471
        %497 = vmatpush.msra.mxu0 %v470
        %498 = vmatpush.msra.mxu0 %v469
        %499 = vmatpush.msra.mxu0 %v468
        %500 = vmatpush.msra.mxu0 %v467
        %501 = vmatpush.msra.mxu0 %v466
        %502 = vmatmul.f32.gmra.mxu0 %v464
        %v503 = vpop.f32.mrf.mxu0
        %v504 = vadd.f32 %v484, %v503
        %505 = vmatmul.f32.gmra.mxu0 %v465
        %v506 = vpop.f32.mrf.mxu0
        %v507 = vadd.f32 %v484, %v506
        %508 = vdwg.mxu0
        %vm509 = vcmp.gt.f32.partialorder %v504, 0.0
        %vm510 = vcmp.gt.f32.partialorder %v507, 0.0
        %v511 = vmul.f32 %v504, 0.01
        %v512 = vmul.f32 %v507, 0.01
        %v513 = vsel %vm509, %v504, %v511
        %v514 = vsel %vm510, %v507, %v512
        %v515 = vadd.f32 %v513, %v318
        %v516 = vadd.f32 %v514, %v319
        %517 = vst [vmem:[%s317] sm:$0xff] %v515
        %518 = vst [vmem:[%s317 + $0x8] sm:$0xff] %v516
        %s519 = sand.u32 %s164, 1
        %s520 = scalar_lea.sflag [#allocation4], %s519
        %s521 = sand.u32 %s164, 1
        %s522 = smul.addr %s521, 16
        %s523 = scalar_lea.vmem [#allocation10], %s522
        // Predicated region
        $region61: #{tpu_custom_call.1} parent=43 // pred_check
          %p524 = pneg %p174
        $region62: #{tpu_custom_call.1} parent=43 // pred_check_branch
          %526 = sbr.rel (%p524) target = $region64
        $region63: #{tpu_custom_call.1} parent=43 // pred_region
          %528 = vsyncadd %s520, 0
          %s529 = smul.addr %s25, 2
          %s530 = smul.addr %s529, 8
          %s531 = scalar_lea.hbm %s6, %s530
          %s532 = sshll.u32 %s523, 4
          %s533 = int_to_ptr.vmem [resolvable:$true] %s532
          %s534 = sshll.u32 %s531, 4
          %s535 = int_to_ptr.hbm [resolvable:$true] %s534
          %540 = dma.vmem_to_hbm [thread:$0]  %s533, 256, %s535, %s520, 128, 128, 8
        $region64: #{tpu_custom_call.1} parent=43 // pred_fallthru
          _
      $region44: #{tpu_custom_call.1} parent=5 // pred_fallthru
        _
      %p541 = scmp.le.s32.totalorder 2, %s20
      // Predicated region
      $region65: #{tpu_custom_call.1} parent=5 // pred_check
        %p542 = pneg %p541
      $region66: #{tpu_custom_call.1} parent=5 // pred_check_branch
        %544 = sbr.rel (%p542) target = $region68
      $region67: #{tpu_custom_call.1} parent=5 // pred_region
        %s545 = ssub.s32 %s20, 2
        // Predicated region
        $region69: #{tpu_custom_call.1} parent=67 // pred_check
          %p546 = pneg %p180
        $region70: #{tpu_custom_call.1} parent=67 // pred_check_branch
          %548 = sbr.rel (%p546) target = $region72
        $region71: #{tpu_custom_call.1} parent=67 // pred_region
          %s549 = sand.u32 %s165, 1
          %s550 = scalar_lea.sflag [#allocation4], %s549
          %s551 = sand.u32 %s165, 1
          %s552 = smul.addr %s551, 16
          %s553 = scalar_lea.vmem [#allocation10], %s552
          %555 = dma.done %s550, 256
        $region72: #{tpu_custom_call.1} parent=67 // pred_fallthru
          _
      $region68: #{tpu_custom_call.1} parent=5 // pred_fallthru
        _
    $region6: #{tpu_custom_call.1} parent=1 // loop_footer
      %s24 = sadd.s32 1, %s20
    $region7: #{tpu_custom_call.1} parent=1 // loop_footer_branch
      %19 = sbr.rel target = $region3
    $region8: #{tpu_custom_call.1} parent=1 // loop_exit
      _
    %556 = vsyncpa [#allocation3], 1
    %s557 = scalar_lea.sflag [#allocation3], 1
    %558 = vsyncpa %s557, 1
    %559 = vsyncpa [#allocation6], 1
    %560 = vsyncpa [#allocation9], 1
    %561 = vsyncpa [#allocation4], 1
    %s562 = scalar_lea.sflag [#allocation4], 1
    %563 = vsyncpa %s562, 1

</llo_original>
